<compile_context>
chip_gen: v7x
topology: tpu7x:2x2x1
jax: 0.10.0
libtpu: 0.0.40
codegen_flags: <defaults>
</compile_context>

<pallas_src>
import jax
import jax.numpy as jnp
from jax.experimental import pallas as pl
from jax.experimental.pallas import tpu as pltpu

# ---------------------------------------------------------------------------
# Problem sizes (consistent with the module's __init__)
# ---------------------------------------------------------------------------
N = 16          # number of graph nodes
IN_CH = 8       # in_channels
HID_CH = 8      # hidden_channels
HEADS = 8       # heads of gat1
OUT_CH = 16     # out_channels
FC_OUT = 2      # final Linear(out_channels, 2)

NEG_SLOPE = 0.2   # GATConv default LeakyReLU slope
NEG_INF = -1e30

LANES = HEADS * N          # 128  -> packed score lane width (exactly one vreg wide)
PROJ1 = HEADS * HID_CH     # 64

# ---------------------------------------------------------------------------
# Parameter/constant slab layout: one [SLAB_ROWS, 128] f32 array
# ---------------------------------------------------------------------------
ROW_W1F   = 0     # [IN_CH, PROJ1 + 2*HEADS] = [8, 80]   fused [W1 | W1@a_src | W1@a_dst]
ROW_EHD   = 8     # [HEADS, LANES]           = [8, 128]  E[h, h*N+j] = 1   (head expander)
ROW_TEYE  = 16    # [N, LANES]               = [16, 128] TEYE[j, h*N+j'] = (j == j')
ROW_HMASK = 32    # [LANES, PROJ1]           = [128, 64] HMASK[h*N+j, h'*HID+d] = (h == h')
ROW_W2F   = 160   # [PROJ1, OUT_CH + 2]      = [64, 18]  fused [W2 | W2@a_src2 | W2@a_dst2]
ROW_FCW   = 224   # [OUT_CH, FC_OUT]         = [16, 2]
ROW_B1    = 240   # [1, PROJ1]
ROW_B2    = 248   # [1, OUT_CH]
ROW_FCB   = 256   # [1, FC_OUT]
SLAB_ROWS = 264


# ---------------------------------------------------------------------------
# Pallas kernel: whole forward pass (working set ~200 KiB -> trivially fits VMEM)
# ---------------------------------------------------------------------------
def prm_gnn_kernel(x_ref, adjb_ref, p_ref, out_ref):
    def slab(row, nrows, ncols):
        # load full 128-lane rows, slice the value (cheap, proven-safe path)
        return p_ref[row:row + nrows, :][:, 0:ncols]

    x = x_ref[...]                                   # [N, IN_CH]
    adjb_t = adjb_ref[...]                           # [N, HEADS*N]  additive mask, tiled per head

    w1f   = slab(ROW_W1F, IN_CH, PROJ1 + 2 * HEADS)  # [8, 80]
    e_hd  = slab(ROW_EHD, HEADS, LANES)              # [8, 128]
    teye  = slab(ROW_TEYE, N, LANES)                 # [16, 128]
    hmask = slab(ROW_HMASK, LANES, PROJ1)            # [128, 64]
    w2f   = slab(ROW_W2F, PROJ1, OUT_CH + 2)         # [64, 18]
    fcw   = slab(ROW_FCW, OUT_CH, FC_OUT)            # [16, 2]
    b1    = slab(ROW_B1, 1, PROJ1)                   # [1, 64]
    b2    = slab(ROW_B2, 1, OUT_CH)                  # [1, 16]
    fcb   = slab(ROW_FCB, 1, FC_OUT)                 # [1, 2]

    ones_nn = jnp.ones((N, N), jnp.float32)

    # ------------- GAT layer 1 (HEADS heads, concat=True), fused projection -------------
    proj1 = jnp.dot(x, w1f, preferred_element_type=jnp.float32)        # [N, 80]
    h1    = proj1[:, 0:PROJ1]                                          # [N, 64]
    a_src = proj1[:, PROJ1:PROJ1 + HEADS]                              # [N, 8]
    a_dst = proj1[:, PROJ1 + HEADS:PROJ1 + 2 * HEADS]                  # [N, 8]

    # lane-packed scores: s[i, h*N+j] = leaky(a_dst[i,h] + a_src[j,h]) + adj_bias[i,j]
    dst_part = jnp.dot(a_dst, e_hd, preferred_element_type=jnp.float32)           # [N,128]
    src_scat = jnp.dot(a_src, e_hd, preferred_element_type=jnp.float32) * teye    # [N,128]
    src_part = jnp.dot(ones_nn, src_scat, preferred_element_type=jnp.float32)     # [N,128]
    s = dst_part + src_part
    s = jnp.where(s > 0, s, NEG_SLOPE * s)                                         # LeakyReLU
    s = s + adjb_t                                                                 # mask (add)
    # shared-shift softmax: the per-row max (over all heads) is a valid shift per head segment
    s = s - jnp.max(s, axis=-1, keepdims=True)
    p = jnp.exp(s)                                                                 # [N,128]

    # aggregation directly into [N, HEADS*HID] layout; normalization deferred to the output
    r     = jnp.concatenate([h1] * HEADS, axis=0) * hmask                          # [128, 64]
    agg   = jnp.dot(p, r, preferred_element_type=jnp.float32)                      # [N, 64]
    denom = jnp.dot(p, hmask, preferred_element_type=jnp.float32)                  # [N, 64]
    h_cat = agg * pl.reciprocal(denom, approx=True) + b1                           # [N, 64]

    # ------------- ELU -------------
    h_act = jnp.where(h_cat > 0, h_cat, jnp.exp(h_cat) - 1.0)

    # ------------- GAT layer 2 (1 head, concat=False), fused projection -------------
    proj2  = jnp.dot(h_act, w2f, preferred_element_type=jnp.float32)               # [N, 18]
    h2     = proj2[:, 0:OUT_CH]                                                    # [N, 16]
    a_src2 = proj2[:, OUT_CH:OUT_CH + 1]                                           # [N, 1]
    a_dst2 = proj2[:, OUT_CH + 1:OUT_CH + 2]                                       # [N, 1]

    eye_n = teye[:, 0:N]                                                           # [N, N] identity
    src2  = jnp.dot(ones_nn, a_src2 * eye_n, preferred_element_type=jnp.float32)   # [N, N]
    s2 = a_dst2 + src2
    s2 = jnp.where(s2 > 0, s2, NEG_SLOPE * s2)
    s2 = s2 + adjb_t[:, 0:N]
    s2 = s2 - jnp.max(s2, axis=-1, keepdims=True)
    p2 = jnp.exp(s2)
    inv2 = pl.reciprocal(jnp.sum(p2, axis=-1, keepdims=True), approx=True)         # [N, 1]
    o2 = jnp.dot(p2, h2, preferred_element_type=jnp.float32) * inv2 + b2           # [N, 16]

    # ------------- fc + log_softmax(dim=1) -------------
    logits = jnp.dot(o2, fcw, preferred_element_type=jnp.float32) + fcb            # [N, 2]
    z = logits - jnp.max(logits, axis=-1, keepdims=True)
    out_ref[...] = z - jnp.log(jnp.sum(jnp.exp(z), axis=-1, keepdims=True))


@jax.jit
def prm_gnn_forward(x, adj_bias_tiled, param_slab):
    return pl.pallas_call(
        prm_gnn_kernel,
        out_shape=jax.ShapeDtypeStruct((N, FC_OUT), jnp.float32),
        in_specs=[pl.BlockSpec(memory_space=pltpu.MemorySpace.VMEM)] * 3,
        out_specs=pl.BlockSpec(memory_space=pltpu.MemorySpace.VMEM),
    )(x, adj_bias_tiled, param_slab)


# ---------------------------------------------------------------------------
# Wrapper-side packing: constants + fused weights -> one slab; adjacency -> additive bias
# ---------------------------------------------------------------------------
def make_constants():
    head_of_col = jnp.arange(LANES) // N
    j_of_col    = jnp.arange(LANES) % N
    e_hd  = (head_of_col[None, :] == jnp.arange(HEADS)[:, None]).astype(jnp.float32)  # [8, 128]
    teye  = (j_of_col[None, :] == jnp.arange(N)[:, None]).astype(jnp.float32)         # [16, 128]
    head_of_out = jnp.arange(PROJ1) // HID_CH
    hmask = (head_of_col[:, None] == head_of_out[None, :]).astype(jnp.float32)        # [128, 64]
    return e_hd, teye, hmask


def pack_param_slab(params):
    w1, asrc1, adst1, b1, w2, asrc2, adst2, b2, fcw, fcb = params
    w1f = jnp.concatenate([w1, w1 @ asrc1, w1 @ adst1], axis=1)   # [8, 80]
    w2f = jnp.concatenate([w2, w2 @ asrc2, w2 @ adst2], axis=1)   # [64, 18]
    e_hd, teye, hmask = make_constants()
    slab = jnp.zeros((SLAB_ROWS, LANES), jnp.float32)
    for row, arr in ((ROW_W1F, w1f), (ROW_EHD, e_hd), (ROW_TEYE, teye),
                     (ROW_HMASK, hmask), (ROW_W2F, w2f), (ROW_FCW, fcw),
                     (ROW_B1, b1), (ROW_B2, b2), (ROW_FCB, fcb)):
        r, c = arr.shape
        slab = slab.at[row:row + r, 0:c].set(arr)
    return slab


def make_adj_bias_tiled(adj):
    bias = jnp.where(adj > 0, 0.0, NEG_INF).astype(jnp.float32)   # [N, N]
    return jnp.tile(bias, (1, HEADS))                             # [N, HEADS*N] = [16, 128]


# ---------------------------------------------------------------------------
# Pure-JAX reference (unfused, per-head, exact division) for a sanity check
# ---------------------------------------------------------------------------
def prm_gnn_ref(x, adj, params):
    (w1, asrc1, adst1, b1, w2, asrc2, adst2, b2, fcw, fcb) = params
    h1 = x @ w1
    a_src = h1 @ asrc1
    a_dst = h1 @ adst1
    outs = []
    for h in range(HEADS):
        s = a_dst[:, h:h + 1] + a_src[:, h][None, :]
        s = jnp.where(s > 0, s, NEG_SLOPE * s)
        s = jnp.where(adj > 0, s, NEG_INF)
        s = s - jnp.max(s, axis=-1, keepdims=True)
        p = jnp.exp(s)
        p = p / jnp.sum(p, axis=-1, keepdims=True)
        outs.append(p @ h1[:, h * HID_CH:(h + 1) * HID_CH])
    hcat = jnp.concatenate(outs, axis=-1) + b1
    hact = jnp.where(hcat > 0, hcat, jnp.exp(hcat) - 1.0)
    h2 = hact @ w2
    a_src2 = h2 @ asrc2
    a_dst2 = h2 @ adst2
    s2 = a_dst2 + a_src2.T
    s2 = jnp.where(s2 > 0, s2, NEG_SLOPE * s2)
    s2 = jnp.where(adj > 0, s2, NEG_INF)
    s2 = s2 - jnp.max(s2, axis=-1, keepdims=True)
    p2 = jnp.exp(s2)
    p2 = p2 / jnp.sum(p2, axis=-1, keepdims=True)
    o2 = p2 @ h2 + b2
    logits = o2 @ fcw + fcb
    return jax.nn.log_softmax(logits, axis=1)


# ---------------------------------------------------------------------------
# Deterministic parameter / graph construction
# ---------------------------------------------------------------------------
def make_params(key):
    keys = jax.random.split(key, 12)
    scale = 0.2
    w1 = scale * jax.random.normal(keys[0], (IN_CH, HEADS * HID_CH), jnp.float32)
    att_src1 = scale * jax.random.normal(keys[1], (HEADS, HID_CH), jnp.float32)
    att_dst1 = scale * jax.random.normal(keys[2], (HEADS, HID_CH), jnp.float32)
    asrc1 = jnp.zeros((HEADS * HID_CH, HEADS), jnp.float32)
    adst1 = jnp.zeros((HEADS * HID_CH, HEADS), jnp.float32)
    for h in range(HEADS):
        asrc1 = asrc1.at[h * HID_CH:(h + 1) * HID_CH, h].set(att_src1[h])
        adst1 = adst1.at[h * HID_CH:(h + 1) * HID_CH, h].set(att_dst1[h])
    b1 = scale * jax.random.normal(keys[3], (1, HEADS * HID_CH), jnp.float32)

    w2 = scale * jax.random.normal(keys[4], (HEADS * HID_CH, OUT_CH), jnp.float32)
    asrc2 = scale * jax.random.normal(keys[5], (OUT_CH, 1), jnp.float32)
    adst2 = scale * jax.random.normal(keys[6], (OUT_CH, 1), jnp.float32)
    b2 = scale * jax.random.normal(keys[7], (1, OUT_CH), jnp.float32)

    fcw = scale * jax.random.normal(keys[8], (OUT_CH, FC_OUT), jnp.float32)
    fcb = scale * jax.random.normal(keys[9], (1, FC_OUT), jnp.float32)
    return (w1, asrc1, adst1, b1, w2, asrc2, adst2, b2, fcw, fcb)


def make_graph(key):
    # Deterministic synthetic edge_index (replaces the CSV read in the original code):
    # a ring plus a few random edges; dense adjacency with self loops, adj[target, source] = 1.
    src = jnp.arange(N, dtype=jnp.int32)
    dst = (src + 1) % N
    extra_src = jax.random.randint(key, (N,), 0, N).astype(jnp.int32)
    extra_dst = jax.random.randint(jax.random.fold_in(key, 1), (N,), 0, N).astype(jnp.int32)
    src = jnp.concatenate([src, extra_src])
    dst = jnp.concatenate([dst, extra_dst])
    adj = jnp.zeros((N, N), jnp.float32)
    adj = adj.at[dst, src].set(1.0)
    adj = adj.at[jnp.arange(N), jnp.arange(N)].set(1.0)  # self loops
    return adj


if __name__ == "__main__":
    key = jax.random.PRNGKey(0)
    k_x, k_p, k_g = jax.random.split(key, 3)

    x = jax.random.normal(k_x, (N, IN_CH), jnp.float32)
    params = make_params(k_p)
    adj = make_graph(k_g)

    adj_bias_tiled = make_adj_bias_tiled(adj)
    slab = pack_param_slab(params)

    out = jax.block_until_ready(prm_gnn_forward(x, adj_bias_tiled, slab))
    ref = prm_gnn_ref(x, adj, params)

    assert out.shape == (N, FC_OUT)
    # approx reciprocal (EUP) in the kernel vs exact division in the reference -> 3e-3 tolerance
    assert jnp.allclose(out, ref, atol=3e-3, rtol=3e-3), "Pallas kernel mismatch vs reference"
    print("KERNEL_OK")
</pallas_src>

<mosaic_0001>
module attributes {stable_mosaic.version = 11 : i64} {
  func.func @prm_gnn_kernel(%arg0: memref<16x8xf32, #tpu.memory_space<vmem>>, %arg1: memref<16x128xf32, #tpu.memory_space<vmem>>, %arg2: memref<264x128xf32, #tpu.memory_space<vmem>>, %arg3: memref<16x2xf32, #tpu.memory_space<vmem>>) attributes {dimension_semantics = [], scalar_prefetch = 0 : i64, scratch_operands = 0 : i64, tpu.core_type = #tpu.core_type<tc>} {
    %c0 = arith.constant 0 : index
    %c0_0 = arith.constant 0 : index
    %0 = vector.load %arg0[%c0, %c0_0] : memref<16x8xf32, #tpu.memory_space<vmem>>, vector<16x8xf32>
    %c0_1 = arith.constant 0 : index
    %c0_2 = arith.constant 0 : index
    %1 = vector.load %arg1[%c0_1, %c0_2] : memref<16x128xf32, #tpu.memory_space<vmem>>, vector<16x128xf32>
    %c0_3 = arith.constant 0 : index
    %c0_4 = arith.constant 0 : index
    %2 = vector.load %arg2[%c0_3, %c0_4] : memref<264x128xf32, #tpu.memory_space<vmem>>, vector<8x128xf32>
    %3 = vector.extract_strided_slice %2 {offsets = [0, 0], sizes = [8, 80], strides = [1, 1]} : vector<8x128xf32> to vector<8x80xf32>
    %c8 = arith.constant 8 : index
    %c0_5 = arith.constant 0 : index
    %4 = vector.load %arg2[%c8, %c0_5] : memref<264x128xf32, #tpu.memory_space<vmem>>, vector<8x128xf32>
    %c16 = arith.constant 16 : index
    %c0_6 = arith.constant 0 : index
    %5 = vector.load %arg2[%c16, %c0_6] : memref<264x128xf32, #tpu.memory_space<vmem>>, vector<16x128xf32>
    %c32 = arith.constant 32 : index
    %c0_7 = arith.constant 0 : index
    %6 = vector.load %arg2[%c32, %c0_7] : memref<264x128xf32, #tpu.memory_space<vmem>>, vector<128x128xf32>
    %7 = vector.extract_strided_slice %6 {offsets = [0, 0], sizes = [128, 64], strides = [1, 1]} : vector<128x128xf32> to vector<128x64xf32>
    %c160 = arith.constant 160 : index
    %c0_8 = arith.constant 0 : index
    %8 = vector.load %arg2[%c160, %c0_8] : memref<264x128xf32, #tpu.memory_space<vmem>>, vector<64x128xf32>
    %9 = vector.extract_strided_slice %8 {offsets = [0, 0], sizes = [64, 18], strides = [1, 1]} : vector<64x128xf32> to vector<64x18xf32>
    %c224 = arith.constant 224 : index
    %c0_9 = arith.constant 0 : index
    %10 = vector.load %arg2[%c224, %c0_9] : memref<264x128xf32, #tpu.memory_space<vmem>>, vector<16x128xf32>
    %11 = vector.extract_strided_slice %10 {offsets = [0, 0], sizes = [16, 2], strides = [1, 1]} : vector<16x128xf32> to vector<16x2xf32>
    %c240 = arith.constant 240 : index
    %c0_10 = arith.constant 0 : index
    %12 = vector.load %arg2[%c240, %c0_10] : memref<264x128xf32, #tpu.memory_space<vmem>>, vector<1x128xf32>
    %13 = vector.extract_strided_slice %12 {offsets = [0, 0], sizes = [1, 64], strides = [1, 1]} : vector<1x128xf32> to vector<1x64xf32>
    %c248 = arith.constant 248 : index
    %c0_11 = arith.constant 0 : index
    %14 = vector.load %arg2[%c248, %c0_11] : memref<264x128xf32, #tpu.memory_space<vmem>>, vector<1x128xf32>
    %15 = vector.extract_strided_slice %14 {offsets = [0, 0], sizes = [1, 16], strides = [1, 1]} : vector<1x128xf32> to vector<1x16xf32>
    %c256 = arith.constant 256 : index
    %c0_12 = arith.constant 0 : index
    %16 = vector.load %arg2[%c256, %c0_12] : memref<264x128xf32, #tpu.memory_space<vmem>>, vector<1x128xf32>
    %17 = vector.extract_strided_slice %16 {offsets = [0, 0], sizes = [1, 2], strides = [1, 1]} : vector<1x128xf32> to vector<1x2xf32>
    %cst = arith.constant 1.000000e+00 : f32
    %18 = vector.broadcast %cst : f32 to vector<16x16xf32>
    %cst_13 = arith.constant dense<0.000000e+00> : vector<16x80xf32>
    %19 = tpu.matmul %0, %3, %cst_13 {dimension_numbers = #tpu.dot_dimension_numbers<[1], [0], [0], [1], [0, 0, 1, 1], [], []>} : vector<16x8xf32>, vector<8x80xf32>, vector<16x80xf32> -> vector<16x80xf32>
    %20 = vector.extract_strided_slice %19 {offsets = [0, 0], sizes = [16, 64], strides = [1, 1]} : vector<16x80xf32> to vector<16x64xf32>
    %21 = vector.extract_strided_slice %19 {offsets = [0, 64], sizes = [16, 8], strides = [1, 1]} : vector<16x80xf32> to vector<16x8xf32>
    %22 = vector.extract_strided_slice %19 {offsets = [0, 72], sizes = [16, 8], strides = [1, 1]} : vector<16x80xf32> to vector<16x8xf32>
    %cst_14 = arith.constant dense<0.000000e+00> : vector<16x128xf32>
    %23 = tpu.matmul %22, %4, %cst_14 {dimension_numbers = #tpu.dot_dimension_numbers<[1], [0], [0], [1], [0, 0, 1, 1], [], []>} : vector<16x8xf32>, vector<8x128xf32>, vector<16x128xf32> -> vector<16x128xf32>
    %cst_15 = arith.constant dense<0.000000e+00> : vector<16x128xf32>
    %24 = tpu.matmul %21, %4, %cst_15 {dimension_numbers = #tpu.dot_dimension_numbers<[1], [0], [0], [1], [0, 0, 1, 1], [], []>} : vector<16x8xf32>, vector<8x128xf32>, vector<16x128xf32> -> vector<16x128xf32>
    %25 = arith.mulf %24, %5 : vector<16x128xf32>
    %cst_16 = arith.constant dense<0.000000e+00> : vector<16x128xf32>
    %26 = tpu.matmul %18, %25, %cst_16 {dimension_numbers = #tpu.dot_dimension_numbers<[1], [0], [0], [1], [0, 0, 1, 1], [], []>} : vector<16x16xf32>, vector<16x128xf32>, vector<16x128xf32> -> vector<16x128xf32>
    %27 = arith.addf %23, %26 : vector<16x128xf32>
    %cst_17 = arith.constant 0.000000e+00 : f32
    %28 = vector.broadcast %cst_17 : f32 to vector<16x128xf32>
    %29 = arith.cmpf ogt, %27, %28 : vector<16x128xf32>
    %cst_18 = arith.constant 2.000000e-01 : f32
    %30 = vector.broadcast %cst_18 : f32 to vector<16x128xf32>
    %31 = arith.mulf %30, %27 : vector<16x128xf32>
    %32 = arith.select %29, %27, %31 : vector<16x128xi1>, vector<16x128xf32>
    %33 = arith.addf %32, %1 : vector<16x128xf32>
    %cst_19 = arith.constant dense<0xFF800000> : vector<16xf32>
    %34 = vector.multi_reduction <maximumf>, %33, %cst_19 [1] : vector<16x128xf32> to vector<16xf32>
    %35 = vector.shape_cast %34 : vector<16xf32> to vector<16x1xf32>
    %36 = vector.broadcast %35 : vector<16x1xf32> to vector<16x128xf32>
    %37 = arith.subf %33, %36 : vector<16x128xf32>
    %38 = math.exp %37 : vector<16x128xf32>
    %39 = tpu.concatenate %20, %20, %20, %20, %20, %20, %20, %20 in 0 : vector<16x64xf32>, vector<16x64xf32>, vector<16x64xf32>, vector<16x64xf32>, vector<16x64xf32>, vector<16x64xf32>, vector<16x64xf32>, vector<16x64xf32> -> vector<128x64xf32>
    %40 = arith.mulf %39, %7 : vector<128x64xf32>
    %cst_20 = arith.constant dense<0.000000e+00> : vector<16x64xf32>
    %41 = tpu.matmul %38, %40, %cst_20 {dimension_numbers = #tpu.dot_dimension_numbers<[1], [0], [0], [1], [0, 0, 1, 1], [], []>} : vector<16x128xf32>, vector<128x64xf32>, vector<16x64xf32> -> vector<16x64xf32>
    %cst_21 = arith.constant dense<0.000000e+00> : vector<16x64xf32>
    %42 = tpu.matmul %38, %7, %cst_21 {dimension_numbers = #tpu.dot_dimension_numbers<[1], [0], [0], [1], [0, 0, 1, 1], [], []>} : vector<16x128xf32>, vector<128x64xf32>, vector<16x64xf32> -> vector<16x64xf32>
    %43 = tpu.reciprocal %42 {approx = true} : vector<16x64xf32> -> vector<16x64xf32>
    %44 = arith.mulf %41, %43 : vector<16x64xf32>
    %45 = vector.broadcast %13 : vector<1x64xf32> to vector<16x64xf32>
    %46 = arith.addf %44, %45 : vector<16x64xf32>
    %cst_22 = arith.constant 0.000000e+00 : f32
    %47 = vector.broadcast %cst_22 : f32 to vector<16x64xf32>
    %48 = arith.cmpf ogt, %46, %47 : vector<16x64xf32>
    %49 = math.exp %46 : vector<16x64xf32>
    %cst_23 = arith.constant 1.000000e+00 : f32
    %50 = vector.broadcast %cst_23 : f32 to vector<16x64xf32>
    %51 = arith.subf %49, %50 : vector<16x64xf32>
    %52 = arith.select %48, %46, %51 : vector<16x64xi1>, vector<16x64xf32>
    %cst_24 = arith.constant dense<0.000000e+00> : vector<16x18xf32>
    %53 = tpu.matmul %52, %9, %cst_24 {dimension_numbers = #tpu.dot_dimension_numbers<[1], [0], [0], [1], [0, 0, 1, 1], [], []>} : vector<16x64xf32>, vector<64x18xf32>, vector<16x18xf32> -> vector<16x18xf32>
    %54 = vector.extract_strided_slice %53 {offsets = [0, 0], sizes = [16, 16], strides = [1, 1]} : vector<16x18xf32> to vector<16x16xf32>
    %55 = vector.extract_strided_slice %53 {offsets = [0, 16], sizes = [16, 1], strides = [1, 1]} : vector<16x18xf32> to vector<16x1xf32>
    %56 = vector.extract_strided_slice %53 {offsets = [0, 17], sizes = [16, 1], strides = [1, 1]} : vector<16x18xf32> to vector<16x1xf32>
    %57 = vector.extract_strided_slice %5 {offsets = [0, 0], sizes = [16, 16], strides = [1, 1]} : vector<16x128xf32> to vector<16x16xf32>
    %58 = vector.broadcast %55 : vector<16x1xf32> to vector<16x16xf32>
    %59 = arith.mulf %58, %57 : vector<16x16xf32>
    %cst_25 = arith.constant dense<0.000000e+00> : vector<16x16xf32>
    %60 = tpu.matmul %18, %59, %cst_25 {dimension_numbers = #tpu.dot_dimension_numbers<[1], [0], [0], [1], [0, 0, 1, 1], [], []>} : vector<16x16xf32>, vector<16x16xf32>, vector<16x16xf32> -> vector<16x16xf32>
    %61 = vector.broadcast %56 : vector<16x1xf32> to vector<16x16xf32>
    %62 = arith.addf %61, %60 : vector<16x16xf32>
    %cst_26 = arith.constant 0.000000e+00 : f32
    %63 = vector.broadcast %cst_26 : f32 to vector<16x16xf32>
    %64 = arith.cmpf ogt, %62, %63 : vector<16x16xf32>
    %cst_27 = arith.constant 2.000000e-01 : f32
    %65 = vector.broadcast %cst_27 : f32 to vector<16x16xf32>
    %66 = arith.mulf %65, %62 : vector<16x16xf32>
    %67 = arith.select %64, %62, %66 : vector<16x16xi1>, vector<16x16xf32>
    %68 = vector.extract_strided_slice %1 {offsets = [0, 0], sizes = [16, 16], strides = [1, 1]} : vector<16x128xf32> to vector<16x16xf32>
    %69 = arith.addf %67, %68 : vector<16x16xf32>
    %cst_28 = arith.constant dense<0xFF800000> : vector<16xf32>
    %70 = vector.multi_reduction <maximumf>, %69, %cst_28 [1] : vector<16x16xf32> to vector<16xf32>
    %71 = vector.shape_cast %70 : vector<16xf32> to vector<16x1xf32>
    %72 = vector.broadcast %71 : vector<16x1xf32> to vector<16x16xf32>
    %73 = arith.subf %69, %72 : vector<16x16xf32>
    %74 = math.exp %73 : vector<16x16xf32>
    %cst_29 = arith.constant dense<0.000000e+00> : vector<16xf32>
    %75 = vector.multi_reduction <add>, %74, %cst_29 [1] : vector<16x16xf32> to vector<16xf32>
    %76 = vector.shape_cast %75 : vector<16xf32> to vector<16x1xf32>
    %77 = tpu.reciprocal %76 {approx = true} : vector<16x1xf32> -> vector<16x1xf32>
    %cst_30 = arith.constant dense<0.000000e+00> : vector<16x16xf32>
    %78 = tpu.matmul %74, %54, %cst_30 {dimension_numbers = #tpu.dot_dimension_numbers<[1], [0], [0], [1], [0, 0, 1, 1], [], []>} : vector<16x16xf32>, vector<16x16xf32>, vector<16x16xf32> -> vector<16x16xf32>
    %79 = vector.broadcast %77 : vector<16x1xf32> to vector<16x16xf32>
    %80 = arith.mulf %78, %79 : vector<16x16xf32>
    %81 = vector.broadcast %15 : vector<1x16xf32> to vector<16x16xf32>
    %82 = arith.addf %80, %81 : vector<16x16xf32>
    %cst_31 = arith.constant dense<0.000000e+00> : vector<16x2xf32>
    %83 = tpu.matmul %82, %11, %cst_31 {dimension_numbers = #tpu.dot_dimension_numbers<[1], [0], [0], [1], [0, 0, 1, 1], [], []>} : vector<16x16xf32>, vector<16x2xf32>, vector<16x2xf32> -> vector<16x2xf32>
    %84 = vector.broadcast %17 : vector<1x2xf32> to vector<16x2xf32>
    %85 = arith.addf %83, %84 : vector<16x2xf32>
    %cst_32 = arith.constant dense<0xFF800000> : vector<16xf32>
    %86 = vector.multi_reduction <maximumf>, %85, %cst_32 [1] : vector<16x2xf32> to vector<16xf32>
    %87 = vector.shape_cast %86 : vector<16xf32> to vector<16x1xf32>
    %88 = vector.broadcast %87 : vector<16x1xf32> to vector<16x2xf32>
    %89 = arith.subf %85, %88 : vector<16x2xf32>
    %90 = math.exp %89 : vector<16x2xf32>
    %cst_33 = arith.constant dense<0.000000e+00> : vector<16xf32>
    %91 = vector.multi_reduction <add>, %90, %cst_33 [1] : vector<16x2xf32> to vector<16xf32>
    %92 = vector.shape_cast %91 : vector<16xf32> to vector<16x1xf32>
    %93 = math.log %92 : vector<16x1xf32>
    %94 = vector.broadcast %93 : vector<16x1xf32> to vector<16x2xf32>
    %95 = arith.subf %89, %94 : vector<16x2xf32>
    %c0_34 = arith.constant 0 : index
    %c0_35 = arith.constant 0 : index
    %96 = vector.load %arg3[%c0_34, %c0_35] : memref<16x2xf32, #tpu.memory_space<vmem>>, vector<16x2xf32>
    tpu.vector_store %arg3[%c0_34, %c0_35], %95 {strides = array<i32>} : memref<16x2xf32, #tpu.memory_space<vmem>>, vector<16x2xf32>,
    return
  }
}

</mosaic_0001>

<llo_original>
// kernel: prm_gnn_forward.1
$region0: #{prm_gnn_forward.1}
  #allocation0 [shape = 'u32[]', space=smem, size = 0x4, offset = 0x4, fixed_abs, tag = 'smem constant byte address 0x4 - core index']
  #allocation1 [shape = 'u32[144,128]{1,0:T(1,128)}', space=vmem, size = 0x12000, scoped, tag = 'internal scratch']
  %s0 = inlined_call_operand.vmem [shape: f32[16,8], index: 0, kind: input, shape index: {}]
  %s1 = inlined_call_operand.vmem [shape: f32[16,128], index: 1, kind: input, shape index: {}]
  %s2 = inlined_call_operand.hbm [shape: f32[264,128], index: 2, kind: input, shape index: {}]
  %s3 = inlined_call_operand.vmem [shape: f32[16,2], index: 3, kind: output, shape index: {}]
  %s4 = sld [smem:[#allocation0]]
  $region26: #{prm_gnn_forward.1} parent=0
    _
  %s6 = ssub.s32 1, %s4
  %s7 = scalar_select 0, %s6, %s4
  $region1: #{prm_gnn_forward.1} parent=0
    #allocation2 [shape = 'u8[135168]{0}', space=vmem, size = 0x21000, scoped, tag = 'input window, operand 2, single buffered']
    #allocation3 [shape = 's32[1]{0}', space=sflag, size = 0x4, scoped, tag = 'scoped memory for prm_gnn_forward.1']
    %8 = vsyncpa [#allocation3], 0
    // Predicated region
    $region2: #{prm_gnn_forward.1} parent=1 // pred_check
      _
    $region3: #{prm_gnn_forward.1} parent=1 // pred_check_branch
      %10 = sbr.rel (0) target = $region5
    $region4: #{prm_gnn_forward.1} parent=1 // pred_region
      _
    $region5: #{prm_gnn_forward.1} parent=1 // pred_fallthru
      _
    // Predicated region
    $region6: #{prm_gnn_forward.1} parent=1 // pred_check
      _
    $region7: #{prm_gnn_forward.1} parent=1 // pred_check_branch
      %12 = sbr.rel (0) target = $region9
    $region8: #{prm_gnn_forward.1} parent=1 // pred_region
      _
    $region9: #{prm_gnn_forward.1} parent=1 // pred_fallthru
      _
    // Predicated region
    $region10: #{prm_gnn_forward.1} parent=1 // pred_check
      _
    $region11: #{prm_gnn_forward.1} parent=1 // pred_check_branch
      %14 = sbr.rel (0) target = $region13
    $region12: #{prm_gnn_forward.1} parent=1 // pred_region
      %s16 = ssub.s32 4224, 4224
      %17 = vsyncadd [#allocation3], %s16
      %s18 = sshll.u32 [#allocation2], 4
      %s19 = int_to_ptr.vmem [resolvable:$true] %s18
      %24 = dma.hbm_to_vmem [thread:$0]  %s2, 4224, %s19, [#allocation3], 128, 128, 8
    $region13: #{prm_gnn_forward.1} parent=1 // pred_fallthru
      _
    // Predicated region
    $region14: #{prm_gnn_forward.1} parent=1 // pred_check
      _
    $region15: #{prm_gnn_forward.1} parent=1 // pred_check_branch
      %26 = sbr.rel (0) target = $region17
    $region16: #{prm_gnn_forward.1} parent=1 // pred_region
      %27 = dma.done [#allocation3], 4224
    $region17: #{prm_gnn_forward.1} parent=1 // pred_fallthru
      _
    %v28 = vld [vmem:[%s0] sm:$0xff]
    %v29 = vld [vmem:[%s0 + $0x8] sm:$0xff]
    %v30 = vld [vmem:[%s1] sm:$0xff]
    %v31 = vld [vmem:[%s1 + $0x8] sm:$0xff]
    %v32 = vld [vmem:[#allocation2] sm:$0xff]
    %v33 = vld [vmem:[#allocation2 + $0x8] sm:$0xff]
    %v34 = vld [vmem:[#allocation2 + $0x10] sm:$0xff]
    %v35 = vld [vmem:[#allocation2 + $0x18] sm:$0xff]
    %v36 = vld [vmem:[#allocation2 + $0x20] sm:$0xff]
    %v37 = vld [vmem:[#allocation2 + $0x28] sm:$0xff]
    %v38 = vld [vmem:[#allocation2 + $0x30] sm:$0xff]
    %v39 = vld [vmem:[#allocation2 + $0x38] sm:$0xff]
    %v40 = vld [vmem:[#allocation2 + $0x40] sm:$0xff]
    %v41 = vld [vmem:[#allocation2 + $0x48] sm:$0xff]
    %v42 = vld [vmem:[#allocation2 + $0x50] sm:$0xff]
    %v43 = vld [vmem:[#allocation2 + $0x58] sm:$0xff]
    %v44 = vld [vmem:[#allocation2 + $0x60] sm:$0xff]
    %v45 = vld [vmem:[#allocation2 + $0x68] sm:$0xff]
    %v46 = vld [vmem:[#allocation2 + $0x70] sm:$0xff]
    %v47 = vld [vmem:[#allocation2 + $0x78] sm:$0xff]
    %v48 = vld [vmem:[#allocation2 + $0x80] sm:$0xff]
    %v49 = vld [vmem:[#allocation2 + $0x88] sm:$0xff]
    %v50 = vld [vmem:[#allocation2 + $0x90] sm:$0xff]
    %v51 = vld [vmem:[#allocation2 + $0x98] sm:$0xff]
    %v52 = vld [vmem:[#allocation2 + $0xa0] sm:$0xff]
    %v53 = vld [vmem:[#allocation2 + $0xa8] sm:$0xff]
    %v54 = vld [vmem:[#allocation2 + $0xb0] sm:$0xff]
    %v55 = vld [vmem:[#allocation2 + $0xb8] sm:$0xff]
    %v56 = vld [vmem:[#allocation2 + $0xc0] sm:$0xff]
    %v57 = vld [vmem:[#allocation2 + $0xc8] sm:$0xff]
    %v58 = vld [vmem:[#allocation2 + $0xd0] sm:$0xff]
    %v59 = vld [vmem:[#allocation2 + $0xd8] sm:$0xff]
    %v60 = vld [vmem:[#allocation2 + $0xe0] sm:$0xff]
    %v61 = vld [vmem:[#allocation2 + $0xe8] sm:$0xff]
    %v62 = vld [vmem:[#allocation2 + $0xf0] sm:$0x1]
    %v63 = vld [vmem:[#allocation2 + $0xf8] sm:$0x1]
    %v64 = vld [vmem:[#allocation2 + $0x100] sm:$0x1]
    %vm65 = vcmask 64512
    %v67 = vsel %vm65, %v28, 0
    %v70 = vsel %vm65, %v29, 0
    %72 = vmatprep.subr.mxu0 0.0
    %73 = vmatpush1.msra.mxu0 %v32
    %74 = vmatprep.subr.mxu0 0.0
    %75 = vmatpush1.msra.mxu0 0.0
    %76 = vmatprep.subr.mxu0 0.0
    %77 = vmatpush1.msra.mxu0 0.0
    %78 = vmatprep.subr.mxu0 0.0
    %79 = vmatpush1.msra.mxu0 0.0
    %80 = vmatprep.subr.mxu0 0.0
    %81 = vmatpush1.msra.mxu0 0.0
    %82 = vmatprep.subr.mxu0 0.0
    %83 = vmatpush1.msra.mxu0 0.0
    %84 = vmatprep.subr.mxu0 0.0
    %85 = vmatpush1.msra.mxu0 0.0
    %86 = vmatprep.subr.mxu0 0.0
    %87 = vmatpush1.msra.mxu0 0.0
    %88 = vmatprep.subr.mxu0 0.0
    %89 = vmatpush1.msra.mxu0 0.0
    %90 = vmatprep.subr.mxu0 0.0
    %91 = vmatpush1.msra.mxu0 0.0
    %92 = vmatprep.subr.mxu0 0.0
    %93 = vmatpush1.msra.mxu0 0.0
    %94 = vmatprep.subr.mxu0 0.0
    %95 = vmatpush1.msra.mxu0 0.0
    %96 = vmatprep.subr.mxu0 0.0
    %97 = vmatpush1.msra.mxu0 0.0
    %98 = vmatprep.subr.mxu0 0.0
    %99 = vmatpush1.msra.mxu0 0.0
    %100 = vmatprep.subr.mxu0 0.0
    %101 = vmatpush1.msra.mxu0 0.0
    %102 = vmatprep.subr.mxu0 0.0
    %103 = vmatpush1.msra.mxu0 0.0
    %104 = vmatprep.subr.mxu0 0.0
    %105 = vmatpush1.msra.mxu0 0.0
    %106 = vmatprep.subr.mxu0 0.0
    %107 = vmatpush1.msra.mxu0 0.0
    %108 = vmatprep.subr.mxu0 0.0
    %109 = vmatpush1.msra.mxu0 0.0
    %110 = vmatprep.subr.mxu0 0.0
    %111 = vmatpush1.msra.mxu0 0.0
    %112 = vmatprep.subr.mxu0 0.0
    %113 = vmatpush1.msra.mxu0 0.0
    %114 = vmatprep.subr.mxu0 0.0
    %115 = vmatpush1.msra.mxu0 0.0
    %116 = vmatprep.subr.mxu0 0.0
    %117 = vmatpush1.msra.mxu0 0.0
    %118 = vmatprep.subr.mxu0 0.0
    %119 = vmatpush1.msra.mxu0 0.0
    %120 = vmatprep.subr.mxu0 0.0
    %121 = vmatpush1.msra.mxu0 0.0
    %122 = vmatprep.subr.mxu0 0.0
    %123 = vmatpush1.msra.mxu0 0.0
    %124 = vmatprep.subr.mxu0 0.0
    %125 = vmatpush1.msra.mxu0 0.0
    %126 = vmatprep.subr.mxu0 0.0
    %127 = vmatpush1.msra.mxu0 0.0
    %128 = vmatprep.subr.mxu0 0.0
    %129 = vmatpush1.msra.mxu0 0.0
    %130 = vmatprep.subr.mxu0 0.0
    %131 = vmatpush1.msra.mxu0 0.0
    %132 = vmatprep.subr.mxu0 0.0
    %133 = vmatpush1.msra.mxu0 0.0
    %134 = vmatprep.subr.mxu0 0.0
    %135 = vmatpush1.msra.mxu0 0.0
    %136 = vmatprep.mubr.f32.mxu0 0.0
    %137 = vmatmul.mubr.f32.gmra.mrb[0].mxu0 %v67
    %v138 = vpop.f32.mrb[0].mxu0
    %v139 = vadd.f32 0.0, %v138
    %v140 = vpop.f32.mrb[0].mxu0
    %141 = vmatprep.mubr.f32.mxu0 0.0
    %142 = vmatmul.mubr.f32.gmra.mrb[0].mxu0 %v70
    %v143 = vpop.f32.mrb[0].mxu0
    %v144 = vadd.f32 0.0, %v143
    %v145 = vpop.f32.mrb[0].mxu0
    %146 = vdwg.mxu0
    %149 = vrot.lane.b32.xlu0 %v139, 64
    %v150 = vpop.permute.xlu0 %149
    %151 = vrot.lane.b32.xlu0 %v144, 64
    %v152 = vpop.permute.xlu0 %151
    %v153 = vsel %vm65, %v150, 0
    %v155 = vsel %vm65, %v152, 0
    %157 = vmatprep.subr.mxu0 0.0
    %158 = vmatpush1.msra.mxu0 %v33
    %159 = vmatprep.subr.mxu0 0.0
    %160 = vmatpush1.msra.mxu0 0.0
    %161 = vmatprep.subr.mxu0 0.0
    %162 = vmatpush1.msra.mxu0 0.0
    %163 = vmatprep.subr.mxu0 0.0
    %164 = vmatpush1.msra.mxu0 0.0
    %165 = vmatprep.subr.mxu0 0.0
    %166 = vmatpush1.msra.mxu0 0.0
    %167 = vmatprep.subr.mxu0 0.0
    %168 = vmatpush1.msra.mxu0 0.0
    %169 = vmatprep.subr.mxu0 0.0
    %170 = vmatpush1.msra.mxu0 0.0
    %171 = vmatprep.subr.mxu0 0.0
    %172 = vmatpush1.msra.mxu0 0.0
    %173 = vmatprep.subr.mxu0 0.0
    %174 = vmatpush1.msra.mxu0 0.0
    %175 = vmatprep.subr.mxu0 0.0
    %176 = vmatpush1.msra.mxu0 0.0
    %177 = vmatprep.subr.mxu0 0.0
    %178 = vmatpush1.msra.mxu0 0.0
    %179 = vmatprep.subr.mxu0 0.0
    %180 = vmatpush1.msra.mxu0 0.0
    %181 = vmatprep.subr.mxu0 0.0
    %182 = vmatpush1.msra.mxu0 0.0
    %183 = vmatprep.subr.mxu0 0.0
    %184 = vmatpush1.msra.mxu0 0.0
    %185 = vmatprep.subr.mxu0 0.0
    %186 = vmatpush1.msra.mxu0 0.0
    %187 = vmatprep.subr.mxu0 0.0
    %188 = vmatpush1.msra.mxu0 0.0
    %189 = vmatprep.subr.mxu0 0.0
    %190 = vmatpush1.msra.mxu0 0.0
    %191 = vmatprep.subr.mxu0 0.0
    %192 = vmatpush1.msra.mxu0 0.0
    %193 = vmatprep.subr.mxu0 0.0
    %194 = vmatpush1.msra.mxu0 0.0
    %195 = vmatprep.subr.mxu0 0.0
    %196 = vmatpush1.msra.mxu0 0.0
    %197 = vmatprep.subr.mxu0 0.0
    %198 = vmatpush1.msra.mxu0 0.0
    %199 = vmatprep.subr.mxu0 0.0
    %200 = vmatpush1.msra.mxu0 0.0
    %201 = vmatprep.subr.mxu0 0.0
    %202 = vmatpush1.msra.mxu0 0.0
    %203 = vmatprep.subr.mxu0 0.0
    %204 = vmatpush1.msra.mxu0 0.0
    %205 = vmatprep.subr.mxu0 0.0
    %206 = vmatpush1.msra.mxu0 0.0
    %207 = vmatprep.subr.mxu0 0.0
    %208 = vmatpush1.msra.mxu0 0.0
    %209 = vmatprep.subr.mxu0 0.0
    %210 = vmatpush1.msra.mxu0 0.0
    %211 = vmatprep.subr.mxu0 0.0
    %212 = vmatpush1.msra.mxu0 0.0
    %213 = vmatprep.subr.mxu0 0.0
    %214 = vmatpush1.msra.mxu0 0.0
    %215 = vmatprep.subr.mxu0 0.0
    %216 = vmatpush1.msra.mxu0 0.0
    %217 = vmatprep.subr.mxu0 0.0
    %218 = vmatpush1.msra.mxu0 0.0
    %219 = vmatprep.subr.mxu0 0.0
    %220 = vmatpush1.msra.mxu0 0.0
    %221 = vmatprep.mubr.f32.mxu0 0.0
    %222 = vmatmul.mubr.f32.gmra.mrb[0].mxu0 %v153
    %v223 = vpop.f32.mrb[0].mxu0
    %v224 = vadd.f32 0.0, %v223
    %v225 = vpop.f32.mrb[0].mxu0
    %226 = vmatprep.mubr.f32.mxu0 0.0
    %227 = vmatmul.mubr.f32.gmra.mrb[0].mxu0 %v155
    %v228 = vpop.f32.mrb[0].mxu0
    %v229 = vadd.f32 0.0, %v228
    %v230 = vpop.f32.mrb[0].mxu0
    %231 = vdwg.mxu0
    %v232 = vmul.f32 %v224, %v34
    %v233 = vmul.f32 %v229, %v35
    %vm234 = vcmask 130048
    %v236 = vsel %vm234, 1.0, 0
    %238 = vmatprep.subr.mxu0 0.0
    %239 = vmatpush1.msra.mxu0 %v232
    %240 = vmatprep.subr.mxu0 0.0
    %241 = vmatpush1.msra.mxu0 %v233
    %242 = vmatprep.subr.mxu0 0.0
    %243 = vmatpush1.msra.mxu0 0.0
    %244 = vmatprep.subr.mxu0 0.0
    %245 = vmatpush1.msra.mxu0 0.0
    %246 = vmatprep.subr.mxu0 0.0
    %247 = vmatpush1.msra.mxu0 0.0
    %248 = vmatprep.subr.mxu0 0.0
    %249 = vmatpush1.msra.mxu0 0.0
    %250 = vmatprep.subr.mxu0 0.0
    %251 = vmatpush1.msra.mxu0 0.0
    %252 = vmatprep.subr.mxu0 0.0
    %253 = vmatpush1.msra.mxu0 0.0
    %254 = vmatprep.subr.mxu0 0.0
    %255 = vmatpush1.msra.mxu0 0.0
    %256 = vmatprep.subr.mxu0 0.0
    %257 = vmatpush1.msra.mxu0 0.0
    %258 = vmatprep.subr.mxu0 0.0
    %259 = vmatpush1.msra.mxu0 0.0
    %260 = vmatprep.subr.mxu0 0.0
    %261 = vmatpush1.msra.mxu0 0.0
    %262 = vmatprep.subr.mxu0 0.0
    %263 = vmatpush1.msra.mxu0 0.0
    %264 = vmatprep.subr.mxu0 0.0
    %265 = vmatpush1.msra.mxu0 0.0
    %266 = vmatprep.subr.mxu0 0.0
    %267 = vmatpush1.msra.mxu0 0.0
    %268 = vmatprep.subr.mxu0 0.0
    %269 = vmatpush1.msra.mxu0 0.0
    %270 = vmatprep.subr.mxu0 0.0
    %271 = vmatpush1.msra.mxu0 0.0
    %272 = vmatprep.subr.mxu0 0.0
    %273 = vmatpush1.msra.mxu0 0.0
    %274 = vmatprep.subr.mxu0 0.0
    %275 = vmatpush1.msra.mxu0 0.0
    %276 = vmatprep.subr.mxu0 0.0
    %277 = vmatpush1.msra.mxu0 0.0
    %278 = vmatprep.subr.mxu0 0.0
    %279 = vmatpush1.msra.mxu0 0.0
    %280 = vmatprep.subr.mxu0 0.0
    %281 = vmatpush1.msra.mxu0 0.0
    %282 = vmatprep.subr.mxu0 0.0
    %283 = vmatpush1.msra.mxu0 0.0
    %284 = vmatprep.subr.mxu0 0.0
    %285 = vmatpush1.msra.mxu0 0.0
    %286 = vmatprep.subr.mxu0 0.0
    %287 = vmatpush1.msra.mxu0 0.0
    %288 = vmatprep.subr.mxu0 0.0
    %289 = vmatpush1.msra.mxu0 0.0
    %290 = vmatprep.subr.mxu0 0.0
    %291 = vmatpush1.msra.mxu0 0.0
    %292 = vmatprep.subr.mxu0 0.0
    %293 = vmatpush1.msra.mxu0 0.0
    %294 = vmatprep.subr.mxu0 0.0
    %295 = vmatpush1.msra.mxu0 0.0
    %296 = vmatprep.subr.mxu0 0.0
    %297 = vmatpush1.msra.mxu0 0.0
    %298 = vmatprep.subr.mxu0 0.0
    %299 = vmatpush1.msra.mxu0 0.0
    %300 = vmatprep.subr.mxu0 0.0
    %301 = vmatpush1.msra.mxu0 0.0
    %302 = vmatprep.mubr.f32.mxu0 0.0
    %303 = vmatmul.mubr.f32.gmra.mrb[0].mxu0 %v236
    %v304 = vpop.f32.mrb[0].mxu0
    %v305 = vadd.f32 0.0, %v304
    %v306 = vpop.f32.mrb[0].mxu0
    %307 = vmatprep.mubr.f32.mxu0 0.0
    %308 = vmatmul.mubr.f32.gmra.mrb[0].mxu0 %v236
    %v309 = vpop.f32.mrb[0].mxu0
    %v310 = vadd.f32 0.0, %v309
    %v311 = vpop.f32.mrb[0].mxu0
    %312 = vdwg.mxu0
    %313 = vrot.lane.b32.xlu0 %v139, 56
    %v314 = vpop.permute.xlu0 %313
    %315 = vrot.lane.b32.xlu0 %v144, 56
    %v316 = vpop.permute.xlu0 %315
    %v317 = vsel %vm65, %v314, 0
    %v319 = vsel %vm65, %v316, 0
    %321 = vmatprep.subr.mxu0 0.0
    %322 = vmatpush1.msra.mxu0 %v33
    %323 = vmatprep.subr.mxu0 0.0
    %324 = vmatpush1.msra.mxu0 0.0
    %325 = vmatprep.subr.mxu0 0.0
    %326 = vmatpush1.msra.mxu0 0.0
    %327 = vmatprep.subr.mxu0 0.0
    %328 = vmatpush1.msra.mxu0 0.0
    %329 = vmatprep.subr.mxu0 0.0
    %330 = vmatpush1.msra.mxu0 0.0
    %331 = vmatprep.subr.mxu0 0.0
    %332 = vmatpush1.msra.mxu0 0.0
    %333 = vmatprep.subr.mxu0 0.0
    %334 = vmatpush1.msra.mxu0 0.0
    %335 = vmatprep.subr.mxu0 0.0
    %336 = vmatpush1.msra.mxu0 0.0
    %337 = vmatprep.subr.mxu0 0.0
    %338 = vmatpush1.msra.mxu0 0.0
    %339 = vmatprep.subr.mxu0 0.0
    %340 = vmatpush1.msra.mxu0 0.0
    %341 = vmatprep.subr.mxu0 0.0
    %342 = vmatpush1.msra.mxu0 0.0
    %343 = vmatprep.subr.mxu0 0.0
    %344 = vmatpush1.msra.mxu0 0.0
    %345 = vmatprep.subr.mxu0 0.0
    %346 = vmatpush1.msra.mxu0 0.0
    %347 = vmatprep.subr.mxu0 0.0
    %348 = vmatpush1.msra.mxu0 0.0
    %349 = vmatprep.subr.mxu0 0.0
    %350 = vmatpush1.msra.mxu0 0.0
    %351 = vmatprep.subr.mxu0 0.0
    %352 = vmatpush1.msra.mxu0 0.0
    %353 = vmatprep.subr.mxu0 0.0
    %354 = vmatpush1.msra.mxu0 0.0
    %355 = vmatprep.subr.mxu0 0.0
    %356 = vmatpush1.msra.mxu0 0.0
    %357 = vmatprep.subr.mxu0 0.0
    %358 = vmatpush1.msra.mxu0 0.0
    %359 = vmatprep.subr.mxu0 0.0
    %360 = vmatpush1.msra.mxu0 0.0
    %361 = vmatprep.subr.mxu0 0.0
    %362 = vmatpush1.msra.mxu0 0.0
    %363 = vmatprep.subr.mxu0 0.0
    %364 = vmatpush1.msra.mxu0 0.0
    %365 = vmatprep.subr.mxu0 0.0
    %366 = vmatpush1.msra.mxu0 0.0
    %367 = vmatprep.subr.mxu0 0.0
    %368 = vmatpush1.msra.mxu0 0.0
    %369 = vmatprep.subr.mxu0 0.0
    %370 = vmatpush1.msra.mxu0 0.0
    %371 = vmatprep.subr.mxu0 0.0
    %372 = vmatpush1.msra.mxu0 0.0
    %373 = vmatprep.subr.mxu0 0.0
    %374 = vmatpush1.msra.mxu0 0.0
    %375 = vmatprep.subr.mxu0 0.0
    %376 = vmatpush1.msra.mxu0 0.0
    %377 = vmatprep.subr.mxu0 0.0
    %378 = vmatpush1.msra.mxu0 0.0
    %379 = vmatprep.subr.mxu0 0.0
    %380 = vmatpush1.msra.mxu0 0.0
    %381 = vmatprep.subr.mxu0 0.0
    %382 = vmatpush1.msra.mxu0 0.0
    %383 = vmatprep.subr.mxu0 0.0
    %384 = vmatpush1.msra.mxu0 0.0
    %385 = vmatprep.mubr.f32.mxu0 0.0
    %386 = vmatmul.mubr.f32.gmra.mrb[0].mxu0 %v317
    %v387 = vpop.f32.mrb[0].mxu0
    %v388 = vadd.f32 %v305, %v387
    %v389 = vpop.f32.mrb[0].mxu0
    %390 = vmatprep.mubr.f32.mxu0 0.0
    %391 = vmatmul.mubr.f32.gmra.mrb[0].mxu0 %v319
    %v392 = vpop.f32.mrb[0].mxu0
    %v393 = vadd.f32 %v310, %v392
    %v394 = vpop.f32.mrb[0].mxu0
    %395 = vdwg.mxu0
    %vm396 = vcmp.gt.f32.partialorder %v388, 0.0
    %vm397 = vcmp.gt.f32.partialorder %v393, 0.0
    %v398 = vmul.f32 %v388, 0.2
    %v399 = vmul.f32 %v393, 0.2
    %v400 = vsel %vm396, %v388, %v398
    %v401 = vsel %vm397, %v393, %v399
    %v402 = vadd.f32 %v400, %v30
    %v403 = vadd.f32 %v401, %v31
    %404 = vmax.xlane.f32.xlu0 %v402
    %v405 = vpop.xlane.xlu0 %404
    %406 = vmax.xlane.f32.xlu0 %v403
    %v407 = vpop.xlane.xlu0 %406
    %v408 = vsub.f32 %v402, %v405
    %v409 = vsub.f32 %v403, %v407
    %v410 = vmul.f32 %v408, 1.442695
    %v411 = vpow.pop %v410
    %v412 = vmul.f32 %v409, 1.442695
    %v413 = vpow.pop %v412
    %v414 = vmul.f32 %v139, %v36
    %v415 = vmul.f32 %v144, %v37
    %v416 = vmul.f32 %v139, %v38
    %v417 = vmul.f32 %v144, %v39
    %v418 = vmul.f32 %v139, %v40
    %v419 = vmul.f32 %v144, %v41
    %v420 = vmul.f32 %v139, %v42
    %v421 = vmul.f32 %v144, %v43
    %v422 = vmul.f32 %v139, %v44
    %v423 = vmul.f32 %v144, %v45
    %v424 = vmul.f32 %v139, %v46
    %v425 = vmul.f32 %v144, %v47
    %v426 = vmul.f32 %v139, %v48
    %v427 = vmul.f32 %v144, %v49
    %v428 = vmul.f32 %v139, %v50
    %v429 = vmul.f32 %v144, %v51
    %430 = vmatprep.subr.mxu0 0.0
    %431 = vmatpush1.msra.mxu0 %v414
    %432 = vmatprep.subr.mxu0 0.0
    %433 = vmatpush1.msra.mxu0 %v415
    %434 = vmatprep.subr.mxu0 0.0
    %435 = vmatpush1.msra.mxu0 %v416
    %436 = vmatprep.subr.mxu0 0.0
    %437 = vmatpush1.msra.mxu0 %v417
    %438 = vmatprep.subr.mxu0 0.0
    %439 = vmatpush1.msra.mxu0 %v418
    %440 = vmatprep.subr.mxu0 0.0
    %441 = vmatpush1.msra.mxu0 %v419
    %442 = vmatprep.subr.mxu0 0.0
    %443 = vmatpush1.msra.mxu0 %v420
    %444 = vmatprep.subr.mxu0 0.0
    %445 = vmatpush1.msra.mxu0 %v421
    %446 = vmatprep.subr.mxu0 0.0
    %447 = vmatpush1.msra.mxu0 %v422
    %448 = vmatprep.subr.mxu0 0.0
    %449 = vmatpush1.msra.mxu0 %v423
    %450 = vmatprep.subr.mxu0 0.0
    %451 = vmatpush1.msra.mxu0 %v424
    %452 = vmatprep.subr.mxu0 0.0
    %453 = vmatpush1.msra.mxu0 %v425
    %454 = vmatprep.subr.mxu0 0.0
    %455 = vmatpush1.msra.mxu0 %v426
    %456 = vmatprep.subr.mxu0 0.0
    %457 = vmatpush1.msra.mxu0 %v427
    %458 = vmatprep.subr.mxu0 0.0
    %459 = vmatpush1.msra.mxu0 %v428
    %460 = vmatprep.subr.mxu0 0.0
    %461 = vmatpush1.msra.mxu0 %v429
    %462 = vmatprep.subr.mxu0 0.0
    %463 = vmatpush1.msra.mxu0 0.0
    %464 = vmatprep.subr.mxu0 0.0
    %465 = vmatpush1.msra.mxu0 0.0
    %466 = vmatprep.subr.mxu0 0.0
    %467 = vmatpush1.msra.mxu0 0.0
    %468 = vmatprep.subr.mxu0 0.0
    %469 = vmatpush1.msra.mxu0 0.0
    %470 = vmatprep.subr.mxu0 0.0
    %471 = vmatpush1.msra.mxu0 0.0
    %472 = vmatprep.subr.mxu0 0.0
    %473 = vmatpush1.msra.mxu0 0.0
    %474 = vmatprep.subr.mxu0 0.0
    %475 = vmatpush1.msra.mxu0 0.0
    %476 = vmatprep.subr.mxu0 0.0
    %477 = vmatpush1.msra.mxu0 0.0
    %478 = vmatprep.subr.mxu0 0.0
    %479 = vmatpush1.msra.mxu0 0.0
    %480 = vmatprep.subr.mxu0 0.0
    %481 = vmatpush1.msra.mxu0 0.0
    %482 = vmatprep.subr.mxu0 0.0
    %483 = vmatpush1.msra.mxu0 0.0
    %484 = vmatprep.subr.mxu0 0.0
    %485 = vmatpush1.msra.mxu0 0.0
    %486 = vmatprep.subr.mxu0 0.0
    %487 = vmatpush1.msra.mxu0 0.0
    %488 = vmatprep.subr.mxu0 0.0
    %489 = vmatpush1.msra.mxu0 0.0
    %490 = vmatprep.subr.mxu0 0.0
    %491 = vmatpush1.msra.mxu0 0.0
    %492 = vmatprep.subr.mxu0 0.0
    %493 = vmatpush1.msra.mxu0 0.0
    %494 = vmatprep.mubr.f32.mxu0 0.0
    %495 = vmatmul.mubr.f32.gmra.mrb[0].mxu0 %v411
    %v496 = vpop.f32.mrb[0].mxu0
    %v497 = vadd.f32 0.0, %v496
    %v498 = vpop.f32.mrb[0].mxu0
    %499 = vmatprep.mubr.f32.mxu0 0.0
    %500 = vmatmul.mubr.f32.gmra.mrb[0].mxu0 %v413
    %v501 = vpop.f32.mrb[0].mxu0
    %v502 = vadd.f32 0.0, %v501
    %v503 = vpop.f32.mrb[0].mxu0
    %504 = vdwg.mxu0
    %505 = vmatprep.subr.mxu0 0.0
    %506 = vmatpush1.msra.mxu0 %v36
    %507 = vmatprep.subr.mxu0 0.0
    %508 = vmatpush1.msra.mxu0 %v37
    %509 = vmatprep.subr.mxu0 0.0
    %510 = vmatpush1.msra.mxu0 %v38
    %511 = vmatprep.subr.mxu0 0.0
    %512 = vmatpush1.msra.mxu0 %v39
    %513 = vmatprep.subr.mxu0 0.0
    %514 = vmatpush1.msra.mxu0 %v40
    %515 = vmatprep.subr.mxu0 0.0
    %516 = vmatpush1.msra.mxu0 %v41
    %517 = vmatprep.subr.mxu0 0.0
    %518 = vmatpush1.msra.mxu0 %v42
    %519 = vmatprep.subr.mxu0 0.0
    %520 = vmatpush1.msra.mxu0 %v43
    %521 = vmatprep.subr.mxu0 0.0
    %522 = vmatpush1.msra.mxu0 %v44
    %523 = vmatprep.subr.mxu0 0.0
    %524 = vmatpush1.msra.mxu0 %v45
    %525 = vmatprep.subr.mxu0 0.0
    %526 = vmatpush1.msra.mxu0 %v46
    %527 = vmatprep.subr.mxu0 0.0
    %528 = vmatpush1.msra.mxu0 %v47
    %529 = vmatprep.subr.mxu0 0.0
    %530 = vmatpush1.msra.mxu0 %v48
    %531 = vmatprep.subr.mxu0 0.0
    %532 = vmatpush1.msra.mxu0 %v49
    %533 = vmatprep.subr.mxu0 0.0
    %534 = vmatpush1.msra.mxu0 %v50
    %535 = vmatprep.subr.mxu0 0.0
    %536 = vmatpush1.msra.mxu0 %v51
    %537 = vmatprep.subr.mxu0 0.0
    %538 = vmatpush1.msra.mxu0 0.0
    %539 = vmatprep.subr.mxu0 0.0
    %540 = vmatpush1.msra.mxu0 0.0
    %541 = vmatprep.subr.mxu0 0.0
    %542 = vmatpush1.msra.mxu0 0.0
    %543 = vmatprep.subr.mxu0 0.0
    %544 = vmatpush1.msra.mxu0 0.0
    %545 = vmatprep.subr.mxu0 0.0
    %546 = vmatpush1.msra.mxu0 0.0
    %547 = vmatprep.subr.mxu0 0.0
    %548 = vmatpush1.msra.mxu0 0.0
    %549 = vmatprep.subr.mxu0 0.0
    %550 = vmatpush1.msra.mxu0 0.0
    %551 = vmatprep.subr.mxu0 0.0
    %552 = vmatpush1.msra.mxu0 0.0
    %553 = vmatprep.subr.mxu0 0.0
    %554 = vmatpush1.msra.mxu0 0.0
    %555 = vmatprep.subr.mxu0 0.0
    %556 = vmatpush1.msra.mxu0 0.0
    %557 = vmatprep.subr.mxu0 0.0
    %558 = vmatpush1.msra.mxu0 0.0
    %559 = vmatprep.subr.mxu0 0.0
    %560 = vmatpush1.msra.mxu0 0.0
    %561 = vmatprep.subr.mxu0 0.0
    %562 = vmatpush1.msra.mxu0 0.0
    %563 = vmatprep.subr.mxu0 0.0
    %564 = vmatpush1.msra.mxu0 0.0
    %565 = vmatprep.subr.mxu0 0.0
    %566 = vmatpush1.msra.mxu0 0.0
    %567 = vmatprep.subr.mxu0 0.0
    %568 = vmatpush1.msra.mxu0 0.0
    %569 = vmatprep.mubr.f32.mxu0 0.0
    %570 = vmatmul.mubr.f32.gmra.mrb[0].mxu0 %v411
    %v571 = vpop.f32.mrb[0].mxu0
    %v572 = vadd.f32 0.0, %v571
    %v573 = vpop.f32.mrb[0].mxu0
    %574 = vmatprep.mubr.f32.mxu0 0.0
    %575 = vmatmul.mubr.f32.gmra.mrb[0].mxu0 %v413
    %v576 = vpop.f32.mrb[0].mxu0
    %v577 = vadd.f32 0.0, %v576
    %v578 = vpop.f32.mrb[0].mxu0
    %579 = vdwg.mxu0
    %v580 = vrcp.pop %v572
    %v581 = vrcp.pop %v577
    %v582 = vmul.f32 %v497, %v580
    %v583 = vmul.f32 %v502, %v581
    %v584 = vlaneseq
    %v585 = vshrl.u32 %v584, 7
    %v586 = vsub.s32 0, %v585
    %v587 = vrot.slane %v62, %v586
    %v588 = vadd.f32 %v582, %v587
    %v589 = vadd.f32 %v583, %v587
    %vm590 = vcmp.gt.f32.partialorder %v588, 0.0
    %vm591 = vcmp.gt.f32.partialorder %v589, 0.0
    %v592 = vmul.f32 %v588, 1.442695
    %v593 = vpow.pop %v592
    %v594 = vmul.f32 %v589, 1.442695
    %v595 = vpow.pop %v594
    %v596 = vsub.f32 %v593, 1.0
    %v597 = vsub.f32 %v595, 1.0
    %v598 = vsel %vm590, %v588, %v596
    %v599 = vsel %vm591, %v589, %v597
    %vm600 = vcmask 523264
    %v602 = vsel %vm600, %v598, 0
    %v605 = vsel %vm600, %v599, 0
    %607 = vmatprep.subr.mxu0 0.0
    %608 = vmatpush1.msra.mxu0 %v52
    %609 = vmatprep.subr.mxu0 0.0
    %610 = vmatpush1.msra.mxu0 %v53
    %611 = vmatprep.subr.mxu0 0.0
    %612 = vmatpush1.msra.mxu0 %v54
    %613 = vmatprep.subr.mxu0 0.0
    %614 = vmatpush1.msra.mxu0 %v55
    %615 = vmatprep.subr.mxu0 0.0
    %616 = vmatpush1.msra.mxu0 %v56
    %617 = vmatprep.subr.mxu0 0.0
    %618 = vmatpush1.msra.mxu0 %v57
    %619 = vmatprep.subr.mxu0 0.0
    %620 = vmatpush1.msra.mxu0 %v58
    %621 = vmatprep.subr.mxu0 0.0
    %622 = vmatpush1.msra.mxu0 %v59
    %623 = vmatprep.subr.mxu0 0.0
    %624 = vmatpush1.msra.mxu0 0.0
    %625 = vmatprep.subr.mxu0 0.0
    %626 = vmatpush1.msra.mxu0 0.0
    %627 = vmatprep.subr.mxu0 0.0
    %628 = vmatpush1.msra.mxu0 0.0
    %629 = vmatprep.subr.mxu0 0.0
    %630 = vmatpush1.msra.mxu0 0.0
    %631 = vmatprep.subr.mxu0 0.0
    %632 = vmatpush1.msra.mxu0 0.0
    %633 = vmatprep.subr.mxu0 0.0
    %634 = vmatpush1.msra.mxu0 0.0
    %635 = vmatprep.subr.mxu0 0.0
    %636 = vmatpush1.msra.mxu0 0.0
    %637 = vmatprep.subr.mxu0 0.0
    %638 = vmatpush1.msra.mxu0 0.0
    %639 = vmatprep.subr.mxu0 0.0
    %640 = vmatpush1.msra.mxu0 0.0
    %641 = vmatprep.subr.mxu0 0.0
    %642 = vmatpush1.msra.mxu0 0.0
    %643 = vmatprep.subr.mxu0 0.0
    %644 = vmatpush1.msra.mxu0 0.0
    %645 = vmatprep.subr.mxu0 0.0
    %646 = vmatpush1.msra.mxu0 0.0
    %647 = vmatprep.subr.mxu0 0.0
    %648 = vmatpush1.msra.mxu0 0.0
    %649 = vmatprep.subr.mxu0 0.0
    %650 = vmatpush1.msra.mxu0 0.0
    %651 = vmatprep.subr.mxu0 0.0
    %652 = vmatpush1.msra.mxu0 0.0
    %653 = vmatprep.subr.mxu0 0.0
    %654 = vmatpush1.msra.mxu0 0.0
    %655 = vmatprep.subr.mxu0 0.0
    %656 = vmatpush1.msra.mxu0 0.0
    %657 = vmatprep.subr.mxu0 0.0
    %658 = vmatpush1.msra.mxu0 0.0
    %659 = vmatprep.subr.mxu0 0.0
    %660 = vmatpush1.msra.mxu0 0.0
    %661 = vmatprep.subr.mxu0 0.0
    %662 = vmatpush1.msra.mxu0 0.0
    %663 = vmatprep.subr.mxu0 0.0
    %664 = vmatpush1.msra.mxu0 0.0
    %665 = vmatprep.subr.mxu0 0.0
    %666 = vmatpush1.msra.mxu0 0.0
    %667 = vmatprep.subr.mxu0 0.0
    %668 = vmatpush1.msra.mxu0 0.0
    %669 = vmatprep.subr.mxu0 0.0
    %670 = vmatpush1.msra.mxu0 0.0
    %671 = vmatprep.mubr.f32.mxu0 0.0
    %672 = vmatmul.mubr.f32.gmra.mrb[0].mxu0 %v602
    %v673 = vpop.f32.mrb[0].mxu0
    %v674 = vadd.f32 0.0, %v673
    %v675 = vpop.f32.mrb[0].mxu0
    %676 = vmatprep.mubr.f32.mxu0 0.0
    %677 = vmatmul.mubr.f32.gmra.mrb[0].mxu0 %v605
    %v678 = vpop.f32.mrb[0].mxu0
    %v679 = vadd.f32 0.0, %v678
    %v680 = vpop.f32.mrb[0].mxu0
    %681 = vdwg.mxu0
    %683 = vset.pattern.permute.xlu0 16
    %684 = vperm.xlu0 %683, %v674
    %v685 = vpop.permute.xlu0 %684
    %688 = vset.pattern.permute.xlu0 16
    %689 = vperm.xlu0 %688, %v679
    %v690 = vpop.permute.xlu0 %689
    %v692 = vmul.f32 %v685, %v34
    %v693 = vmul.f32 %v690, %v35
    %694 = vmatprep.subr.mxu0 0.0
    %695 = vmatpush1.msra.mxu0 %v692
    %696 = vmatprep.subr.mxu0 0.0
    %697 = vmatpush1.msra.mxu0 %v693
    %698 = vmatprep.subr.mxu0 0.0
    %699 = vmatpush1.msra.mxu0 0.0
    %700 = vmatprep.subr.mxu0 0.0
    %701 = vmatpush1.msra.mxu0 0.0
    %702 = vmatprep.subr.mxu0 0.0
    %703 = vmatpush1.msra.mxu0 0.0
    %704 = vmatprep.subr.mxu0 0.0
    %705 = vmatpush1.msra.mxu0 0.0
    %706 = vmatprep.subr.mxu0 0.0
    %707 = vmatpush1.msra.mxu0 0.0
    %708 = vmatprep.subr.mxu0 0.0
    %709 = vmatpush1.msra.mxu0 0.0
    %710 = vmatprep.subr.mxu0 0.0
    %711 = vmatpush1.msra.mxu0 0.0
    %712 = vmatprep.subr.mxu0 0.0
    %713 = vmatpush1.msra.mxu0 0.0
    %714 = vmatprep.subr.mxu0 0.0
    %715 = vmatpush1.msra.mxu0 0.0
    %716 = vmatprep.subr.mxu0 0.0
    %717 = vmatpush1.msra.mxu0 0.0
    %718 = vmatprep.subr.mxu0 0.0
    %719 = vmatpush1.msra.mxu0 0.0
    %720 = vmatprep.subr.mxu0 0.0
    %721 = vmatpush1.msra.mxu0 0.0
    %722 = vmatprep.subr.mxu0 0.0
    %723 = vmatpush1.msra.mxu0 0.0
    %724 = vmatprep.subr.mxu0 0.0
    %725 = vmatpush1.msra.mxu0 0.0
    %726 = vmatprep.subr.mxu0 0.0
    %727 = vmatpush1.msra.mxu0 0.0
    %728 = vmatprep.subr.mxu0 0.0
    %729 = vmatpush1.msra.mxu0 0.0
    %730 = vmatprep.subr.mxu0 0.0
    %731 = vmatpush1.msra.mxu0 0.0
    %732 = vmatprep.subr.mxu0 0.0
    %733 = vmatpush1.msra.mxu0 0.0
    %734 = vmatprep.subr.mxu0 0.0
    %735 = vmatpush1.msra.mxu0 0.0
    %736 = vmatprep.subr.mxu0 0.0
    %737 = vmatpush1.msra.mxu0 0.0
    %738 = vmatprep.subr.mxu0 0.0
    %739 = vmatpush1.msra.mxu0 0.0
    %740 = vmatprep.subr.mxu0 0.0
    %741 = vmatpush1.msra.mxu0 0.0
    %742 = vmatprep.subr.mxu0 0.0
    %743 = vmatpush1.msra.mxu0 0.0
    %744 = vmatprep.subr.mxu0 0.0
    %745 = vmatpush1.msra.mxu0 0.0
    %746 = vmatprep.subr.mxu0 0.0
    %747 = vmatpush1.msra.mxu0 0.0
    %748 = vmatprep.subr.mxu0 0.0
    %749 = vmatpush1.msra.mxu0 0.0
    %750 = vmatprep.subr.mxu0 0.0
    %751 = vmatpush1.msra.mxu0 0.0
    %752 = vmatprep.subr.mxu0 0.0
    %753 = vmatpush1.msra.mxu0 0.0
    %754 = vmatprep.subr.mxu0 0.0
    %755 = vmatpush1.msra.mxu0 0.0
    %756 = vmatprep.subr.mxu0 0.0
    %757 = vmatpush1.msra.mxu0 0.0
    %758 = vmatprep.mubr.f32.mxu0 0.0
    %759 = vmatmul.mubr.f32.gmra.mrb[0].mxu0 %v236
    %v760 = vpop.f32.mrb[0].mxu0
    %v761 = vadd.f32 0.0, %v760
    %v762 = vpop.f32.mrb[0].mxu0
    %763 = vmatprep.mubr.f32.mxu0 0.0
    %764 = vmatmul.mubr.f32.gmra.mrb[0].mxu0 %v236
    %v765 = vpop.f32.mrb[0].mxu0
    %v766 = vadd.f32 0.0, %v765
    %v767 = vpop.f32.mrb[0].mxu0
    %768 = vdwg.mxu0
    %769 = vset.pattern.permute.xlu0 17
    %770 = vperm.xlu0 %769, %v674
    %v771 = vpop.permute.xlu0 %770
    %773 = vset.pattern.permute.xlu0 17
    %774 = vperm.xlu0 %773, %v679
    %v775 = vpop.permute.xlu0 %774
    %v777 = vadd.f32 %v771, %v761
    %v778 = vadd.f32 %v775, %v766
    %vm779 = vcmp.gt.f32.partialorder %v777, 0.0
    %vm780 = vcmp.gt.f32.partialorder %v778, 0.0
    %v781 = vmul.f32 %v777, 0.2
    %v782 = vmul.f32 %v778, 0.2
    %v783 = vsel %vm779, %v777, %v781
    %v784 = vsel %vm780, %v778, %v782
    %v785 = vadd.f32 %v783, %v30
    %v786 = vadd.f32 %v784, %v31
    %v787 = vsel %vm234, %v785, -inf
    %788 = vmax.xlane.f32.xlu0 %v787
    %v789 = vpop.xlane.xlu0 %788
    %v790 = vsel %vm234, %v786, -inf
    %791 = vmax.xlane.f32.xlu0 %v790
    %v792 = vpop.xlane.xlu0 %791
    %v793 = vsub.f32 %v785, %v789
    %v794 = vsub.f32 %v786, %v792
    %v795 = vmul.f32 %v793, 1.442695
    %v796 = vpow.pop %v795
    %v797 = vmul.f32 %v794, 1.442695
    %v798 = vpow.pop %v797
    %v799 = vsel %vm234, %v796, 0.0
    %800 = vadd.xlane.f32.xlu0 %v799
    %v801 = vpop.xlane.xlu0 %800
    %v802 = vsel %vm234, %v798, 0.0
    %803 = vadd.xlane.f32.xlu0 %v802
    %v804 = vpop.xlane.xlu0 %803
    %v805 = vrcp.pop %v801
    %v806 = vrcp.pop %v804
    %v808 = vsel %vm234, %v796, 0
    %v811 = vsel %vm234, %v798, 0
    %813 = vmatprep.subr.mxu0 0.0
    %814 = vmatpush1.msra.mxu0 %v674
    %815 = vmatprep.subr.mxu0 0.0
    %816 = vmatpush1.msra.mxu0 %v679
    %817 = vmatprep.subr.mxu0 0.0
    %818 = vmatpush1.msra.mxu0 0.0
    %819 = vmatprep.subr.mxu0 0.0
    %820 = vmatpush1.msra.mxu0 0.0
    %821 = vmatprep.subr.mxu0 0.0
    %822 = vmatpush1.msra.mxu0 0.0
    %823 = vmatprep.subr.mxu0 0.0
    %824 = vmatpush1.msra.mxu0 0.0
    %825 = vmatprep.subr.mxu0 0.0
    %826 = vmatpush1.msra.mxu0 0.0
    %827 = vmatprep.subr.mxu0 0.0
    %828 = vmatpush1.msra.mxu0 0.0
    %829 = vmatprep.subr.mxu0 0.0
    %830 = vmatpush1.msra.mxu0 0.0
    %831 = vmatprep.subr.mxu0 0.0
    %832 = vmatpush1.msra.mxu0 0.0
    %833 = vmatprep.subr.mxu0 0.0
    %834 = vmatpush1.msra.mxu0 0.0
    %835 = vmatprep.subr.mxu0 0.0
    %836 = vmatpush1.msra.mxu0 0.0
    %837 = vmatprep.subr.mxu0 0.0
    %838 = vmatpush1.msra.mxu0 0.0
    %839 = vmatprep.subr.mxu0 0.0
    %840 = vmatpush1.msra.mxu0 0.0
    %841 = vmatprep.subr.mxu0 0.0
    %842 = vmatpush1.msra.mxu0 0.0
    %843 = vmatprep.subr.mxu0 0.0
    %844 = vmatpush1.msra.mxu0 0.0
    %845 = vmatprep.subr.mxu0 0.0
    %846 = vmatpush1.msra.mxu0 0.0
    %847 = vmatprep.subr.mxu0 0.0
    %848 = vmatpush1.msra.mxu0 0.0
    %849 = vmatprep.subr.mxu0 0.0
    %850 = vmatpush1.msra.mxu0 0.0
    %851 = vmatprep.subr.mxu0 0.0
    %852 = vmatpush1.msra.mxu0 0.0
    %853 = vmatprep.subr.mxu0 0.0
    %854 = vmatpush1.msra.mxu0 0.0
    %855 = vmatprep.subr.mxu0 0.0
    %856 = vmatpush1.msra.mxu0 0.0
    %857 = vmatprep.subr.mxu0 0.0
    %858 = vmatpush1.msra.mxu0 0.0
    %859 = vmatprep.subr.mxu0 0.0
    %860 = vmatpush1.msra.mxu0 0.0
    %861 = vmatprep.subr.mxu0 0.0
    %862 = vmatpush1.msra.mxu0 0.0
    %863 = vmatprep.subr.mxu0 0.0
    %864 = vmatpush1.msra.mxu0 0.0
    %865 = vmatprep.subr.mxu0 0.0
    %866 = vmatpush1.msra.mxu0 0.0
    %867 = vmatprep.subr.mxu0 0.0
    %868 = vmatpush1.msra.mxu0 0.0
    %869 = vmatprep.subr.mxu0 0.0
    %870 = vmatpush1.msra.mxu0 0.0
    %871 = vmatprep.subr.mxu0 0.0
    %872 = vmatpush1.msra.mxu0 0.0
    %873 = vmatprep.subr.mxu0 0.0
    %874 = vmatpush1.msra.mxu0 0.0
    %875 = vmatprep.subr.mxu0 0.0
    %876 = vmatpush1.msra.mxu0 0.0
    %877 = vmatprep.mubr.f32.mxu0 0.0
    %878 = vmatmul.mubr.f32.gmra.mrb[0].mxu0 %v808
    %v879 = vpop.f32.mrb[0].mxu0
    %v880 = vadd.f32 0.0, %v879
    %v881 = vpop.f32.mrb[0].mxu0
    %882 = vmatprep.mubr.f32.mxu0 0.0
    %883 = vmatmul.mubr.f32.gmra.mrb[0].mxu0 %v811
    %v884 = vpop.f32.mrb[0].mxu0
    %v885 = vadd.f32 0.0, %v884
    %v886 = vpop.f32.mrb[0].mxu0
    %887 = vdwg.mxu0
    %v888 = vmul.f32 %v880, %v805
    %v889 = vmul.f32 %v885, %v806
    %v890 = vlaneseq
    %v891 = vshrl.u32 %v890, 7
    %v892 = vsub.s32 0, %v891
    %v893 = vrot.slane %v63, %v892
    %v894 = vadd.f32 %v888, %v893
    %v895 = vadd.f32 %v889, %v893
    %v896 = vlaneseq
    %v897 = vshrl.u32 %v896, 7
    %v898 = vsub.s32 0, %v897
    %v899 = vrot.slane %v64, %v898
    %v901 = vsel %vm234, %v894, 0
    %v904 = vsel %vm234, %v895, 0
    %906 = vmatprep.subr.mxu0 0.0
    %907 = vmatpush1.msra.mxu0 %v60
    %908 = vmatprep.subr.mxu0 0.0
    %909 = vmatpush1.msra.mxu0 %v61
    %910 = vmatprep.subr.mxu0 0.0
    %911 = vmatpush1.msra.mxu0 0.0
    %912 = vmatprep.subr.mxu0 0.0
    %913 = vmatpush1.msra.mxu0 0.0
    %914 = vmatprep.subr.mxu0 0.0
    %915 = vmatpush1.msra.mxu0 0.0
    %916 = vmatprep.subr.mxu0 0.0
    %917 = vmatpush1.msra.mxu0 0.0
    %918 = vmatprep.subr.mxu0 0.0
    %919 = vmatpush1.msra.mxu0 0.0
    %920 = vmatprep.subr.mxu0 0.0
    %921 = vmatpush1.msra.mxu0 0.0
    %922 = vmatprep.subr.mxu0 0.0
    %923 = vmatpush1.msra.mxu0 0.0
    %924 = vmatprep.subr.mxu0 0.0
    %925 = vmatpush1.msra.mxu0 0.0
    %926 = vmatprep.subr.mxu0 0.0
    %927 = vmatpush1.msra.mxu0 0.0
    %928 = vmatprep.subr.mxu0 0.0
    %929 = vmatpush1.msra.mxu0 0.0
    %930 = vmatprep.subr.mxu0 0.0
    %931 = vmatpush1.msra.mxu0 0.0
    %932 = vmatprep.subr.mxu0 0.0
    %933 = vmatpush1.msra.mxu0 0.0
    %934 = vmatprep.subr.mxu0 0.0
    %935 = vmatpush1.msra.mxu0 0.0
    %936 = vmatprep.subr.mxu0 0.0
    %937 = vmatpush1.msra.mxu0 0.0
    %938 = vmatprep.subr.mxu0 0.0
    %939 = vmatpush1.msra.mxu0 0.0
    %940 = vmatprep.subr.mxu0 0.0
    %941 = vmatpush1.msra.mxu0 0.0
    %942 = vmatprep.subr.mxu0 0.0
    %943 = vmatpush1.msra.mxu0 0.0
    %944 = vmatprep.subr.mxu0 0.0
    %945 = vmatpush1.msra.mxu0 0.0
    %946 = vmatprep.subr.mxu0 0.0
    %947 = vmatpush1.msra.mxu0 0.0
    %948 = vmatprep.subr.mxu0 0.0
    %949 = vmatpush1.msra.mxu0 0.0
    %950 = vmatprep.subr.mxu0 0.0
    %951 = vmatpush1.msra.mxu0 0.0
    %952 = vmatprep.subr.mxu0 0.0
    %953 = vmatpush1.msra.mxu0 0.0
    %954 = vmatprep.subr.mxu0 0.0
    %955 = vmatpush1.msra.mxu0 0.0
    %956 = vmatprep.subr.mxu0 0.0
    %957 = vmatpush1.msra.mxu0 0.0
    %958 = vmatprep.subr.mxu0 0.0
    %959 = vmatpush1.msra.mxu0 0.0
    %960 = vmatprep.subr.mxu0 0.0
    %961 = vmatpush1.msra.mxu0 0.0
    %962 = vmatprep.subr.mxu0 0.0
    %963 = vmatpush1.msra.mxu0 0.0
    %964 = vmatprep.subr.mxu0 0.0
    %965 = vmatpush1.msra.mxu0 0.0
    %966 = vmatprep.subr.mxu0 0.0
    %967 = vmatpush1.msra.mxu0 0.0
    %968 = vmatprep.subr.mxu0 0.0
    %969 = vmatpush1.msra.mxu0 0.0
    %970 = vmatprep.mubr.f32.mxu0 0.0
    %971 = vmatmul.mubr.f32.gmra.mrb[0].mxu0 %v901
    %v972 = vpop.f32.mrb[0].mxu0
    %v973 = vadd.f32 %v899, %v972
    %v974 = vpop.f32.mrb[0].mxu0
    %975 = vmatprep.mubr.f32.mxu0 0.0
    %976 = vmatmul.mubr.f32.gmra.mrb[0].mxu0 %v904
    %v977 = vpop.f32.mrb[0].mxu0
    %v978 = vadd.f32 %v899, %v977
    %v979 = vpop.f32.mrb[0].mxu0
    %980 = vdwg.mxu0
    %vm981 = vcmask 15360
    %v982 = vsel %vm981, %v973, -inf
    %983 = vmax.xlane.f32.xlu0 %v982
    %v984 = vpop.xlane.xlu0 %983
    %v985 = vsel %vm981, %v978, -inf
    %986 = vmax.xlane.f32.xlu0 %v985
    %v987 = vpop.xlane.xlu0 %986
    %v988 = vsub.f32 %v973, %v984
    %v989 = vsub.f32 %v978, %v987
    %v990 = vmul.f32 %v988, 1.442695
    %v991 = vpow.pop %v990
    %v992 = vmul.f32 %v989, 1.442695
    %v993 = vpow.pop %v992
    %v994 = vsel %vm981, %v991, 0.0
    %995 = vadd.xlane.f32.xlu0 %v994
    %v996 = vpop.xlane.xlu0 %995
    %v997 = vsel %vm981, %v993, 0.0
    %998 = vadd.xlane.f32.xlu0 %v997
    %v999 = vpop.xlane.xlu0 %998
    %v1000 = vlog2.pop %v996
    %v1001 = vmul.f32 %v1000, 0.6931472
    %v1002 = vlog2.pop %v999
    %v1003 = vmul.f32 %v1002, 0.6931472
    %v1004 = vsub.f32 %v988, %v1001
    %v1005 = vsub.f32 %v989, %v1003
    %1006 = vst.msk [vmem:[%s3] sm:$0xff] %vm981, %v1004
    %1007 = vst.msk [vmem:[%s3 + $0x8] sm:$0xff] %vm981, %v1005
    // Predicated region
    $region18: #{prm_gnn_forward.1} parent=1 // pred_check
      _
    $region19: #{prm_gnn_forward.1} parent=1 // pred_check_branch
      %1009 = sbr.rel (0) target = $region21
    $region20: #{prm_gnn_forward.1} parent=1 // pred_region
      _
    $region21: #{prm_gnn_forward.1} parent=1 // pred_fallthru
      _
    // Predicated region
    $region22: #{prm_gnn_forward.1} parent=1 // pred_check
      _
    $region23: #{prm_gnn_forward.1} parent=1 // pred_check_branch
      %1011 = sbr.rel (0) target = $region25
    $region24: #{prm_gnn_forward.1} parent=1 // pred_region
      _
    $region25: #{prm_gnn_forward.1} parent=1 // pred_fallthru
      _
    %1012 = vsyncpa [#allocation3], 1

</llo_original>
